<compile_context>
chip_gen: v6e
topology: v6e:2x2x1
jax: 0.10.0
libtpu: 0.0.40
codegen_flags: <defaults>
</compile_context>

<pallas_src>
import math
from functools import partial

import jax
import jax.numpy as jnp
from jax.experimental import pallas as pl
from jax.experimental.pallas import tpu as pltpu


def _build_pe(seq_len: int, d_model: int) -> jnp.ndarray:
    """Faithful port of the PyTorch __init__ buffer construction.

    NOTE: matches the reference exactly, including the absence of exp() on
    div_term.  Assumes even d_model (the PyTorch reference errors otherwise).
    """
    position = jnp.arange(seq_len, dtype=jnp.float32)[:, None]               # (S, 1)
    div_term = (jnp.arange(0, d_model, 2, dtype=jnp.float32)
                * (-math.log(10000.0) / d_model))                            # (D/2,)
    angles = position * div_term                                             # (S, D/2)
    pe = jnp.zeros((seq_len, d_model), jnp.float32)
    pe = pe.at[:, 0::2].set(jnp.sin(angles))
    pe = pe.at[:, 1::2].set(jnp.cos(angles))
    return pe                                                                # (S, D)


def _add_pe_kernel(x_ref, pe_ref, o_ref):
    # x_ref/o_ref: (B, TS, D); pe_ref: (TS, D).  One VPU add per vreg,
    # pe broadcast over the batch axis (so pe is only ever read once from HBM).
    o_ref[...] = x_ref[...] + pe_ref[...][None, :, :]


def _row_tile(B: int, S: int, D: int, itemsize: int,
              target_block_bytes: int = 512 * 1024) -> int:
    """Pick a sequence-row tile so an x block is ~512 KiB (roofline-optimal,
    double-buffered total stays a few MiB on every TPU generation)."""
    rows = max(1, target_block_bytes // max(1, B * D * itemsize))
    if rows >= S:
        return S                      # full dim: always a legal block size
    return max(8, (rows // 8) * 8)    # 2nd-to-last block dim must be a multiple of 8


@partial(jax.jit, donate_argnums=(0,))
def positional_embedding(x, pe):
    """x: (B, S, D); pe: (max_seq_len, D) buffer.
    Returns x + pe[:S] (dropout = identity, eval mode)."""
    B, S, D = x.shape
    # Slice to the actual sequence length and cast to the activation dtype once
    # at trace time -> the kernel streams/adds entirely in x.dtype.
    pe_s = pe[:S, :].astype(x.dtype)

    TS = _row_tile(B, S, D, x.dtype.itemsize)
    grid = (pl.cdiv(S, TS),)

    out = pl.pallas_call(
        _add_pe_kernel,
        out_shape=jax.ShapeDtypeStruct((B, S, D), x.dtype),
        grid=grid,
        in_specs=[
            pl.BlockSpec((B, TS, D), lambda i: (0, i, 0)),   # x: streamed once
            pl.BlockSpec((TS, D), lambda i: (i, 0)),         # pe: streamed once
        ],
        out_specs=pl.BlockSpec((B, TS, D), lambda i: (0, i, 0)),
        input_output_aliases={0: 0},                         # out reuses x's buffer
        compiler_params=pltpu.CompilerParams(
            dimension_semantics=("parallel",)),              # v7x: shard over 2 TCs
    )(x, pe_s)
    # TODO(synk): nn.Dropout is identity in eval mode; training-mode dropout would
    # need pltpu.prng_seed / pltpu.prng_random_bits inside the kernel.
    return out


if __name__ == "__main__":
    key = jax.random.PRNGKey(0)
    B, SEQ_LEN, D_MODEL = 2, 8, 32
    MAX_SEQ_LEN = 16                    # module's seq_len (buffer length); forward slices to S

    pe = _build_pe(MAX_SEQ_LEN, D_MODEL)            # registered buffer ("init" time)
    x = jax.random.normal(key, (B, SEQ_LEN, D_MODEL), jnp.float32)

    # Pure-JAX reference of the PyTorch forward (eval mode).  Computed BEFORE the
    # kernel call because x's buffer is donated to (and aliased with) the output.
    ref = x + pe[None, :SEQ_LEN, :]

    out = positional_embedding(x, pe)
    jax.block_until_ready(out)

    assert out.shape == (B, SEQ_LEN, D_MODEL)
    assert out.dtype == jnp.float32
    assert jnp.allclose(out, ref, atol=1e-6, rtol=1e-6), "kernel/reference mismatch"
    print("KERNEL_OK")
</pallas_src>

<mosaic_0001>
module attributes {stable_mosaic.version = 11 : i64} {
  func.func @_add_pe_kernel(%arg0: i32, %arg1: memref<2x8x32xf32, #tpu.memory_space<vmem>>, %arg2: memref<8x32xf32, #tpu.memory_space<vmem>>, %arg3: memref<2x8x32xf32, #tpu.memory_space<vmem>>) attributes {dimension_semantics = [#tpu.dimension_semantics<parallel>], iteration_bounds = array<i64: 1>, scalar_prefetch = 0 : i64, scratch_operands = 0 : i64, tpu.core_type = #tpu.core_type<tc>, window_params = [{transform_indices = @transform_0, window_bounds = array<i64: 2, 8, 32>}, {transform_indices = @transform_1, window_bounds = array<i64: 8, 32>}, {transform_indices = @transform_2, window_bounds = array<i64: 2, 8, 32>}]} {
    %c0 = arith.constant 0 : index
    %c0_0 = arith.constant 0 : index
    %c0_1 = arith.constant 0 : index
    %0 = vector.load %arg1[%c0, %c0_0, %c0_1] : memref<2x8x32xf32, #tpu.memory_space<vmem>>, vector<2x8x32xf32>
    %c0_2 = arith.constant 0 : index
    %c0_3 = arith.constant 0 : index
    %1 = vector.load %arg2[%c0_2, %c0_3] : memref<8x32xf32, #tpu.memory_space<vmem>>, vector<8x32xf32>
    %2 = vector.shape_cast %1 : vector<8x32xf32> to vector<1x8x32xf32>
    %3 = vector.broadcast %2 : vector<1x8x32xf32> to vector<2x8x32xf32>
    %4 = arith.addf %0, %3 : vector<2x8x32xf32>
    %c0_4 = arith.constant 0 : index
    %c0_5 = arith.constant 0 : index
    %c0_6 = arith.constant 0 : index
    %5 = vector.load %arg3[%c0_4, %c0_5, %c0_6] : memref<2x8x32xf32, #tpu.memory_space<vmem>>, vector<2x8x32xf32>
    tpu.vector_store %arg3[%c0_4, %c0_5, %c0_6], %4 {strides = array<i32>} : memref<2x8x32xf32, #tpu.memory_space<vmem>>, vector<2x8x32xf32>,
    return
  }
  func.func @transform_0(%arg0: i32) -> (i32, i32, i32) {
    %c0_i32 = arith.constant 0 : i32
    %c0_i32_0 = arith.constant 0 : i32
    %c0_i32_1 = arith.constant 0 : i32
    return %c0_i32, %arg0, %c0_i32_0 : i32, i32, i32
  }
  func.func @transform_1(%arg0: i32) -> (i32, i32) {
    %c0_i32 = arith.constant 0 : i32
    %c0_i32_0 = arith.constant 0 : i32
    return %arg0, %c0_i32 : i32, i32
  }
  func.func @transform_2(%arg0: i32) -> (i32, i32, i32) {
    %c0_i32 = arith.constant 0 : i32
    %c0_i32_0 = arith.constant 0 : i32
    %c0_i32_1 = arith.constant 0 : i32
    return %c0_i32, %arg0, %c0_i32_0 : i32, i32, i32
  }
}

</mosaic_0001>

<llo_original>
// kernel: positional_embedding.1
$region0: #{positional_embedding.1}
  #allocation0 [shape = 'u32[]', space=smem, size = 0x4, offset = 0x4, fixed_abs, tag = 'smem constant byte address 0x4 - core index']
  #allocation1 [shape = 'u32[144,128]{1,0:T(1,128)}', space=vmem, size = 0x12000, scoped, tag = 'internal scratch']
  %s0 = inlined_call_operand.hbm [shape: f32[2,8,32], index: 0, kind: input, shape index: {}, may-alias: {0,2}]
  %s1 = inlined_call_operand.vmem [shape: f32[8,32], index: 1, kind: input, shape index: {}]
  %s2 = inlined_call_operand.hbm [shape: f32[2,8,32], index: 2, kind: output, shape index: {}, may-alias: {0,2}]
  %s3 = sld [smem:[#allocation0]]
  $region22: #{positional_embedding.1} parent=0
    _
  %s5 = ssub.s32 1, %s3
  %s6 = scalar_select 0, %s5, %s3
  $region1: #{positional_embedding.1} parent=0
    #allocation2 [shape = 'u8[8192]{0}', space=vmem, size = 0x2000, scoped, tag = 'input window, operand 0, single buffered']
    #allocation3 [shape = 's32[1]{0}', space=sflag, size = 0x4, scoped, tag = 'scoped memory for positional_embedding.1']
    #allocation4 [shape = 's32[1]{0}', space=sflag, size = 0x4, scoped, tag = 'scoped memory for positional_embedding.1']
    #allocation5 [shape = 'u8[8192]{0}', space=vmem, size = 0x2000, scoped, tag = 'output window, operand 0, single buffered']
    %7 = vsyncpa [#allocation3], 0
    %8 = vsyncpa [#allocation4], 0
    // Predicated region
    $region2: #{positional_embedding.1} parent=1 // pred_check
      _
    $region3: #{positional_embedding.1} parent=1 // pred_check_branch
      %10 = sbr.rel (0) target = $region5
    $region4: #{positional_embedding.1} parent=1 // pred_region
      %s12 = ssub.s32 256, 256
      %13 = vsyncadd [#allocation3], %s12
      %s14 = sshll.u32 [#allocation2], 4
      %s15 = int_to_ptr.vmem [resolvable:$true] %s14
      %20 = dma.hbm_to_vmem [thread:$0]  %s0, 256, %s15, [#allocation3], 128, 128, 8
    $region5: #{positional_embedding.1} parent=1 // pred_fallthru
      _
    // Predicated region
    $region6: #{positional_embedding.1} parent=1 // pred_check
      _
    $region7: #{positional_embedding.1} parent=1 // pred_check_branch
      %22 = sbr.rel (0) target = $region9
    $region8: #{positional_embedding.1} parent=1 // pred_region
      _
    $region9: #{positional_embedding.1} parent=1 // pred_fallthru
      _
    // Predicated region
    $region10: #{positional_embedding.1} parent=1 // pred_check
      _
    $region11: #{positional_embedding.1} parent=1 // pred_check_branch
      %24 = sbr.rel (0) target = $region13
    $region12: #{positional_embedding.1} parent=1 // pred_region
      %25 = dma.done [#allocation3], 256
    $region13: #{positional_embedding.1} parent=1 // pred_fallthru
      _
    %v26 = vld [vmem:[#allocation2] sm:$0xff]
    %v27 = vld [vmem:[#allocation2 + $0x8] sm:$0xff]
    %v28 = vld [vmem:[%s1] sm:$0xff]
    %v29 = vadd.f32 %v26, %v28
    %v30 = vadd.f32 %v27, %v28
    %vm31 = vcmask 261120
    %32 = vst.msk [vmem:[#allocation5] sm:$0xff] %vm31, %v29
    %33 = vst.msk [vmem:[#allocation5 + $0x8] sm:$0xff] %vm31, %v30
    // Predicated region
    $region14: #{positional_embedding.1} parent=1 // pred_check
      _
    $region15: #{positional_embedding.1} parent=1 // pred_check_branch
      %35 = sbr.rel (0) target = $region17
    $region16: #{positional_embedding.1} parent=1 // pred_region
      %s37 = ssub.s32 256, 256
      %38 = vsyncadd [#allocation4], %s37
      %s39 = sshll.u32 [#allocation5], 4
      %s40 = int_to_ptr.vmem [resolvable:$true] %s39
      %45 = dma.vmem_to_hbm [thread:$0]  %s40, 256, %s2, [#allocation4], 128, 128, 8
    $region17: #{positional_embedding.1} parent=1 // pred_fallthru
      _
    // Predicated region
    $region18: #{positional_embedding.1} parent=1 // pred_check
      _
    $region19: #{positional_embedding.1} parent=1 // pred_check_branch
      %47 = sbr.rel (0) target = $region21
    $region20: #{positional_embedding.1} parent=1 // pred_region
      %48 = dma.done [#allocation4], 256
    $region21: #{positional_embedding.1} parent=1 // pred_fallthru
      _
    %49 = vsyncpa [#allocation3], 1
    %50 = vsyncpa [#allocation4], 1

</llo_original>
